<compile_context>
chip_gen: v5e
topology: v5e:2x2
jax: 0.10.0
libtpu: 0.0.40
codegen_flags: <defaults>
</compile_context>

<pallas_src>
import functools

import jax
import jax.numpy as jnp
from jax.experimental import pallas as pl
from jax.experimental.pallas import tpu as pltpu


def _round_up(x, m):
    return (x + m - 1) // m * m


def _pick_tile_n(n):
    for t in (512, 256, 128):
        if n % t == 0:
            return t
    return n  # small / odd O: full dim (block dim == array dim is legal)


def _pick_tile_m(T, prefer):
    """Pick a row tile that divides T (multiple of 8) to avoid wrapper pads."""
    for t in (prefer, 512, 256, 128, 64, 32, 16, 8):
        if t <= T and T % t == 0 and t % 8 == 0:
            return t, T
    # Fallback: pad once (e.g. T=729 -> 768).  Padded rows are sliced off.
    tm = prefer if T > prefer else _round_up(T, 8)
    return tm, _round_up(T, tm)


def _vmem_limit_bytes():
    cap = 128 * 1024 * 1024
    try:
        cap = int(pltpu.get_tpu_info().vmem_capacity_bytes)
    except Exception:
        pass
    # Leave headroom for compiler scratch/spills; never request the whole VMEM.
    return int(min(cap - 16 * 1024 * 1024, 100 * 1024 * 1024))


_SQRT1_2 = 0.7071067811865476


def _stage1_kernel(*refs, n_parts, use_ln, use_pos, eps, inv_fin):
    """LN (over the virtually-concatenated feature axis) + pos + Linear1 + GELU.

    Grid: (B, T-tiles, N-tiles), N innermost.  The normalized / casted
    activations are cached in a VMEM scratch at N==0 and reused for all N.
    """
    i = 0
    x_refs = refs[i:i + n_parts]
    i += n_parts
    if use_ln:
        gamma_ref, beta_ref = refs[i], refs[i + 1]
        i += 2
    if use_pos:
        pos_ref = refs[i]
        i += 1
    w1_ref, b1_ref = refs[i], refs[i + 1]
    h_ref = refs[i + 2]
    xn_ref = refs[i + 3]                 # VMEM scratch (n_parts, tm, F), MXU dtype

    @pl.when(pl.program_id(2) == 0)
    def _fill_scratch():
        xs = [x_refs[j][0].astype(jnp.float32) for j in range(n_parts)]
        if use_ln:
            # Two-pass LayerNorm statistics combined across the K blocks.
            s = xs[0].sum(axis=-1, keepdims=True)
            for j in range(1, n_parts):
                s = s + xs[j].sum(axis=-1, keepdims=True)
            mean = s * inv_fin
            v = jnp.square(xs[0] - mean).sum(axis=-1, keepdims=True)
            for j in range(1, n_parts):
                v = v + jnp.square(xs[j] - mean).sum(axis=-1, keepdims=True)
            rstd = jax.lax.rsqrt(v * inv_fin + eps)
        for j in range(n_parts):
            xj = xs[j]
            if use_ln:
                xj = (xj - mean) * rstd
                xj = (xj * gamma_ref[j].astype(jnp.float32)
                      + beta_ref[j].astype(jnp.float32))
            if use_pos:
                xj = xj + pos_ref[j].astype(jnp.float32)
            xn_ref[j] = xj.astype(xn_ref.dtype)

    tm = x_refs[0].shape[1]
    tn = w1_ref.shape[-1]
    acc = jnp.zeros((tm, tn), jnp.float32)
    for j in range(n_parts):             # K-block accumulation (deep_extract)
        acc = acc + jnp.dot(xn_ref[j], w1_ref[j],
                            preferred_element_type=jnp.float32)
    h = acc + b1_ref[...].astype(jnp.float32)
    # torch nn.GELU() default: exact erf formulation.
    h = 0.5 * h * (1.0 + jax.lax.erf(h * _SQRT1_2))
    h_ref[0] = h.astype(h_ref.dtype)


def _stage2_kernel(h_ref, w2_ref, b2_ref, y_ref):
    """Linear2 + bias on one (tm, tn) output tile (h block stays resident)."""
    w2 = w2_ref[...]
    h = h_ref[0].astype(w2.dtype)
    y = jnp.dot(h, w2, preferred_element_type=jnp.float32)
    y_ref[0] = (y + b2_ref[...].astype(jnp.float32)).astype(y_ref.dtype)


def image_adapter_forward(vision_outputs, params, *, ln1, pos_emb, deep_extract,
                          row_tile=256, eps=1e-5, stream_dtype=None):
    """vision_outputs: (L, B, T, F) stack of hidden states (like the torch module)."""
    if deep_extract:
        x_parts = [vision_outputs[-2], vision_outputs[3], vision_outputs[7],
                   vision_outputs[13], vision_outputs[20]]
    else:
        x_parts = [vision_outputs[-2]]
    n_parts = len(x_parts)
    B, T, F = x_parts[0].shape
    fin = n_parts * F

    w1, w2 = params["w1"], params["w2"]
    assert w1.shape[0] == fin, (w1.shape, fin)
    O = w1.shape[1]
    cdt = w1.dtype                        # compute / intermediate dtype (f32 or bf16)

    tm, T_pad = _pick_tile_m(T, row_tile)
    tn = _pick_tile_n(O)
    grid = (B, T_pad // tm, O // tn)
    n_row_tiles = B * (T_pad // tm)
    vmem_cap = _vmem_limit_bytes()
    itemsize = lambda a: jnp.dtype(a.dtype).itemsize

    if stream_dtype is not None:          # e.g. bf16 activation streaming on v7x
        x_parts = [p.astype(stream_dtype) for p in x_parts]
    if T_pad != T:                        # rare fallback (tm does not divide T)
        x_parts = [jnp.pad(p, ((0, 0), (0, T_pad - T), (0, 0))) for p in x_parts]

    # ---------------- stage 1: LN + pos + Linear1 + GELU ----------------
    args, specs = [], []
    for p in x_parts:
        args.append(p)
        specs.append(pl.BlockSpec((1, tm, F), lambda b, t, n: (b, t, 0)))
    if ln1:
        gamma = params["ln_gamma"].reshape(n_parts, 1, F)
        beta = params["ln_beta"].reshape(n_parts, 1, F)
        args += [gamma, beta]
        specs += [pl.BlockSpec((n_parts, 1, F), lambda b, t, n: (0, 0, 0))] * 2
    if pos_emb:
        pos = params["pos_emb"]
        if stream_dtype is not None:
            pos = pos.astype(stream_dtype)
        if T_pad != T:
            pos = jnp.pad(pos, ((0, T_pad - T), (0, 0)))
        pos = jnp.transpose(pos.reshape(T_pad, n_parts, F), (1, 0, 2))
        args.append(pos)
        specs.append(pl.BlockSpec((n_parts, tm, F), lambda b, t, n: (0, t, 0)))
    w1r = w1.reshape(n_parts, F, O)
    b1 = params["b1"].reshape(1, O)
    args += [w1r, b1]
    specs += [pl.BlockSpec((n_parts, F, tn), lambda b, t, n: (0, 0, n)),
              pl.BlockSpec((1, tn), lambda b, t, n: (0, n))]

    flops1 = 2 * B * T_pad * fin * O
    bytes1 = (sum(int(p.size) * itemsize(p) for p in x_parts)
              + int(w1r.size) * itemsize(w1r) * n_row_tiles   # W1 re-streamed per row tile
              + B * T_pad * O * jnp.dtype(cdt).itemsize)
    h = pl.pallas_call(
        functools.partial(_stage1_kernel, n_parts=n_parts, use_ln=ln1,
                          use_pos=pos_emb, eps=eps, inv_fin=1.0 / float(fin)),
        out_shape=jax.ShapeDtypeStruct((B, T_pad, O), cdt),
        grid_spec=pltpu.PrefetchScalarGridSpec(
            num_scalar_prefetch=0, grid=grid,
            in_specs=specs,
            out_specs=pl.BlockSpec((1, tm, tn), lambda b, t, n: (b, t, n)),
            scratch_shapes=[pltpu.VMEM((n_parts, tm, F), cdt)]),
        compiler_params=pltpu.CompilerParams(
            dimension_semantics=("parallel", "parallel", "arbitrary"),
            vmem_limit_bytes=vmem_cap),
        cost_estimate=pl.CostEstimate(flops=int(flops1),
                                      transcendentals=int(B * T_pad * O),
                                      bytes_accessed=int(bytes1)),
    )(*args)

    # ---------------- stage 2: Linear2 ----------------
    b2 = params["b2"].reshape(1, O)
    flops2 = 2 * B * T_pad * O * O
    bytes2 = (int(h.size) * itemsize(h)
              + int(w2.size) * itemsize(w2) * n_row_tiles    # W2 re-streamed per row tile
              + int(b2.size) * itemsize(b2)
              + B * T_pad * O * 4)
    y = pl.pallas_call(
        _stage2_kernel,
        out_shape=jax.ShapeDtypeStruct((B, T_pad, O), jnp.float32),
        grid_spec=pltpu.PrefetchScalarGridSpec(
            num_scalar_prefetch=0, grid=grid,
            in_specs=[pl.BlockSpec((1, tm, O), lambda b, t, n: (b, t, 0)),
                      pl.BlockSpec((O, tn), lambda b, t, n: (0, n)),
                      pl.BlockSpec((1, tn), lambda b, t, n: (0, n))],
            out_specs=pl.BlockSpec((1, tm, tn), lambda b, t, n: (b, t, n))),
        compiler_params=pltpu.CompilerParams(
            dimension_semantics=("parallel", "parallel", "arbitrary"),
            vmem_limit_bytes=vmem_cap),
        cost_estimate=pl.CostEstimate(flops=int(flops2), transcendentals=0,
                                      bytes_accessed=int(bytes2)),
    )(h, w2, b2)

    # Boundary tokens: trivial XLA broadcast+concat (kept out of the kernel so
    # the kernel's stores stay fully lane/sublane dense).
    y = y[:, :T, :]
    ot = params["other_tokens"].astype(jnp.float32)
    t0 = jnp.broadcast_to(ot[0][None, None, :], (B, 1, O))
    t1 = jnp.broadcast_to(ot[1][None, None, :], (B, 1, O))
    return jnp.concatenate((t0, y, t1), axis=1)


def reference_forward(vision_outputs, params, *, ln1, pos_emb, deep_extract):
    """Plain-JAX reference mirroring the PyTorch module."""
    if deep_extract:
        x = jnp.concatenate(
            (vision_outputs[-2], vision_outputs[3], vision_outputs[7],
             vision_outputs[13], vision_outputs[20]), axis=-1)
    else:
        x = vision_outputs[-2]
    x = x.astype(jnp.float32)
    if ln1:
        mean = jnp.mean(x, axis=-1, keepdims=True)
        var = jnp.mean(jnp.square(x - mean), axis=-1, keepdims=True)
        x = (x - mean) / jnp.sqrt(var + 1e-5)
        x = x * params["ln_gamma"] + params["ln_beta"]
    if pos_emb:
        x = x + params["pos_emb"]
    x = x @ params["w1"].astype(jnp.float32) + params["b1"]
    x = jax.nn.gelu(x, approximate=False)
    x = x @ params["w2"].astype(jnp.float32) + params["b2"]
    B = x.shape[0]
    ot = params["other_tokens"]                       # (3, O)
    t0 = jnp.broadcast_to(ot[0:1], (B, 1, ot.shape[1]))
    t1 = jnp.broadcast_to(ot[1:2], (B, 1, ot.shape[1]))
    return jnp.concatenate((t0, x, t1), axis=1)


def make_params(key, input_features, output_features, num_image_tokens,
                deep_extract):
    fin = input_features * 5 if deep_extract else input_features
    k = jax.random.split(key, 6)
    return {
        "w1": 0.05 * jax.random.normal(k[0], (fin, output_features), jnp.float32),
        "b1": 0.05 * jax.random.normal(k[1], (output_features,), jnp.float32),
        "w2": 0.05 * jax.random.normal(k[2], (output_features, output_features), jnp.float32),
        "b2": 0.05 * jax.random.normal(k[3], (output_features,), jnp.float32),
        "ln_gamma": jnp.ones((fin,), jnp.float32),
        "ln_beta": jnp.zeros((fin,), jnp.float32),
        "pos_emb": jnp.zeros((num_image_tokens, fin), jnp.float32),
        "other_tokens": 0.02 * jax.random.normal(k[4], (3, output_features), jnp.float32),
    }


if __name__ == "__main__":
    key = jax.random.PRNGKey(0)
    L, B, T, F, O = 22, 2, 8, 32, 64          # layers, batch, image tokens, feat dims

    kv, kp1, kp2 = jax.random.split(key, 3)
    vision_outputs = jax.random.normal(kv, (L, B, T, F), jnp.float32)

    # f32 params: tight check against the reference.
    for deep_extract, ln1, pos_emb in ((False, True, True),
                                       (True, True, True),
                                       (False, False, False)):
        params = make_params(kp2 if deep_extract else kp1,
                             input_features=F, output_features=O,
                             num_image_tokens=T, deep_extract=deep_extract)
        out = image_adapter_forward(vision_outputs, params, ln1=ln1,
                                    pos_emb=pos_emb, deep_extract=deep_extract)
        out = jax.block_until_ready(out)
        ref = reference_forward(vision_outputs, params, ln1=ln1,
                                pos_emb=pos_emb, deep_extract=deep_extract)
        assert out.shape == (B, T + 2, O), out.shape
        assert jnp.allclose(out, ref, atol=1e-4, rtol=1e-4), (
            "mismatch", deep_extract, ln1, pos_emb,
            float(jnp.max(jnp.abs(out - ref))))

    # bf16 weights + bf16 activation streaming: native bf16 MXU path with f32
    # accumulation (looser check).
    params = make_params(kp1, input_features=F, output_features=O,
                         num_image_tokens=T, deep_extract=False)
    params_bf16 = dict(params,
                       w1=params["w1"].astype(jnp.bfloat16),
                       w2=params["w2"].astype(jnp.bfloat16))
    out = jax.block_until_ready(
        image_adapter_forward(vision_outputs, params_bf16, ln1=True,
                              pos_emb=True, deep_extract=False,
                              stream_dtype=jnp.bfloat16))
    ref = reference_forward(vision_outputs, params, ln1=True, pos_emb=True,
                            deep_extract=False)
    assert jnp.allclose(out, ref, atol=3e-2, rtol=3e-2), (
        "bf16 mismatch", float(jnp.max(jnp.abs(out - ref))))

    print("KERNEL_OK")
</pallas_src>

<mosaic_0001>
module attributes {stable_mosaic.version = 11 : i64} {
  func.func @_stage1_kernel(%arg0: i32, %arg1: i32, %arg2: i32, %arg3: memref<1x8x32xf32, #tpu.memory_space<vmem>>, %arg4: memref<1x1x32xf32, #tpu.memory_space<vmem>>, %arg5: memref<1x1x32xf32, #tpu.memory_space<vmem>>, %arg6: memref<1x8x32xf32, #tpu.memory_space<vmem>>, %arg7: memref<1x32x64xf32, #tpu.memory_space<vmem>>, %arg8: memref<1x64xf32, #tpu.memory_space<vmem>>, %arg9: memref<1x8x64xf32, #tpu.memory_space<vmem>>, %arg10: memref<1x8x32xf32, #tpu.memory_space<vmem>>) attributes {dimension_semantics = [#tpu.dimension_semantics<parallel>, #tpu.dimension_semantics<parallel>, #tpu.dimension_semantics<arbitrary>], iteration_bounds = array<i64: 2, 1, 1>, scalar_prefetch = 0 : i64, scratch_operands = 1 : i64, tpu.core_type = #tpu.core_type<tc>, window_params = [{transform_indices = @transform_0, window_bounds = array<i64: 1, 8, 32>}, {pipeline_mode = #tpu.pipeline_mode<synchronous>, transform_indices = @transform_1, window_bounds = array<i64: 1, 1, 32>}, {pipeline_mode = #tpu.pipeline_mode<synchronous>, transform_indices = @transform_2, window_bounds = array<i64: 1, 1, 32>}, {transform_indices = @transform_3, window_bounds = array<i64: 1, 8, 32>}, {transform_indices = @transform_4, window_bounds = array<i64: 1, 32, 64>}, {transform_indices = @transform_5, window_bounds = array<i64: 1, 64>}, {transform_indices = @transform_6, window_bounds = array<i64: 1, 8, 64>}]} {
    %c0_i32 = arith.constant 0 : i32
    %0 = arith.cmpi eq, %arg2, %c0_i32 : i32
    %1 = arith.extui %0 : i1 to i32
    %c0_i32_0 = arith.constant 0 : i32
    %2 = arith.cmpi ne, %1, %c0_i32_0 : i32
    scf.if %2 {
      %c0_15 = arith.constant 0 : index
      %c0_16 = arith.constant 0 : index
      %c0_17 = arith.constant 0 : index
      %24 = vector.load %arg3[%c0_15, %c0_16, %c0_17] : memref<1x8x32xf32, #tpu.memory_space<vmem>>, vector<1x8x32xf32>
      %25 = vector.shape_cast %24 : vector<1x8x32xf32> to vector<8x32xf32>
      %cst_18 = arith.constant dense<0.000000e+00> : vector<8xf32>
      %26 = vector.multi_reduction <add>, %25, %cst_18 [1] : vector<8x32xf32> to vector<8xf32>
      %27 = vector.shape_cast %26 : vector<8xf32> to vector<8x1xf32>
      %cst_19 = arith.constant 3.125000e-02 : f32
      %28 = vector.broadcast %cst_19 : f32 to vector<8x1xf32>
      %29 = arith.mulf %27, %28 : vector<8x1xf32>
      %30 = vector.broadcast %29 : vector<8x1xf32> to vector<8x32xf32>
      %31 = arith.subf %25, %30 : vector<8x32xf32>
      %32 = arith.mulf %31, %31 : vector<8x32xf32>
      %cst_20 = arith.constant dense<0.000000e+00> : vector<8xf32>
      %33 = vector.multi_reduction <add>, %32, %cst_20 [1] : vector<8x32xf32> to vector<8xf32>
      %34 = vector.shape_cast %33 : vector<8xf32> to vector<8x1xf32>
      %cst_21 = arith.constant 3.125000e-02 : f32
      %35 = vector.broadcast %cst_21 : f32 to vector<8x1xf32>
      %36 = arith.mulf %34, %35 : vector<8x1xf32>
      %cst_22 = arith.constant 9.99999974E-6 : f32
      %37 = vector.broadcast %cst_22 : f32 to vector<8x1xf32>
      %38 = arith.addf %36, %37 : vector<8x1xf32>
      %39 = math.rsqrt %38 : vector<8x1xf32>
      %40 = vector.broadcast %29 : vector<8x1xf32> to vector<8x32xf32>
      %41 = arith.subf %25, %40 : vector<8x32xf32>
      %42 = vector.broadcast %39 : vector<8x1xf32> to vector<8x32xf32>
      %43 = arith.mulf %41, %42 : vector<8x32xf32>
      %c0_23 = arith.constant 0 : index
      %c0_24 = arith.constant 0 : index
      %c0_25 = arith.constant 0 : index
      %44 = vector.load %arg4[%c0_23, %c0_24, %c0_25] : memref<1x1x32xf32, #tpu.memory_space<vmem>>, vector<1x1x32xf32>
      %45 = vector.shape_cast %44 : vector<1x1x32xf32> to vector<1x32xf32>
      %46 = vector.broadcast %45 : vector<1x32xf32> to vector<8x32xf32>
      %47 = arith.mulf %43, %46 : vector<8x32xf32>
      %c0_26 = arith.constant 0 : index
      %c0_27 = arith.constant 0 : index
      %c0_28 = arith.constant 0 : index
      %48 = vector.load %arg5[%c0_26, %c0_27, %c0_28] : memref<1x1x32xf32, #tpu.memory_space<vmem>>, vector<1x1x32xf32>
      %49 = vector.shape_cast %48 : vector<1x1x32xf32> to vector<1x32xf32>
      %50 = vector.broadcast %49 : vector<1x32xf32> to vector<8x32xf32>
      %51 = arith.addf %47, %50 : vector<8x32xf32>
      %c0_29 = arith.constant 0 : index
      %c0_30 = arith.constant 0 : index
      %c0_31 = arith.constant 0 : index
      %52 = vector.load %arg6[%c0_29, %c0_30, %c0_31] : memref<1x8x32xf32, #tpu.memory_space<vmem>>, vector<1x8x32xf32>
      %53 = vector.shape_cast %52 : vector<1x8x32xf32> to vector<8x32xf32>
      %54 = arith.addf %51, %53 : vector<8x32xf32>
      %c0_32 = arith.constant 0 : index
      %c0_33 = arith.constant 0 : index
      %c0_34 = arith.constant 0 : index
      %55 = vector.load %arg10[%c0_32, %c0_33, %c0_34] : memref<1x8x32xf32, #tpu.memory_space<vmem>>, vector<1x8x32xf32>
      %56 = vector.shape_cast %55 : vector<1x8x32xf32> to vector<8x32xf32>
      %57 = vector.shape_cast %54 : vector<8x32xf32> to vector<1x8x32xf32>
      tpu.vector_store %arg10[%c0_32, %c0_33, %c0_34], %57 {strides = array<i32>} : memref<1x8x32xf32, #tpu.memory_space<vmem>>, vector<1x8x32xf32>,
    } else {
    }
    %cst = arith.constant 0.000000e+00 : f32
    %3 = vector.broadcast %cst : f32 to vector<8x64xf32>
    %c0 = arith.constant 0 : index
    %c0_1 = arith.constant 0 : index
    %c0_2 = arith.constant 0 : index
    %4 = vector.load %arg10[%c0, %c0_1, %c0_2] : memref<1x8x32xf32, #tpu.memory_space<vmem>>, vector<1x8x32xf32>
    %5 = vector.shape_cast %4 : vector<1x8x32xf32> to vector<8x32xf32>
    %c0_3 = arith.constant 0 : index
    %c0_4 = arith.constant 0 : index
    %c0_5 = arith.constant 0 : index
    %6 = vector.load %arg7[%c0_3, %c0_4, %c0_5] : memref<1x32x64xf32, #tpu.memory_space<vmem>>, vector<1x32x64xf32>
    %7 = vector.shape_cast %6 : vector<1x32x64xf32> to vector<32x64xf32>
    %cst_6 = arith.constant dense<0.000000e+00> : vector<8x64xf32>
    %8 = tpu.matmul %5, %7, %cst_6 {dimension_numbers = #tpu.dot_dimension_numbers<[1], [0], [0], [1], [0, 0, 1, 1], [], []>} : vector<8x32xf32>, vector<32x64xf32>, vector<8x64xf32> -> vector<8x64xf32>
    %9 = arith.addf %3, %8 : vector<8x64xf32>
    %c0_7 = arith.constant 0 : index
    %c0_8 = arith.constant 0 : index
    %10 = vector.load %arg8[%c0_7, %c0_8] : memref<1x64xf32, #tpu.memory_space<vmem>>, vector<1x64xf32>
    %11 = vector.broadcast %10 : vector<1x64xf32> to vector<8x64xf32>
    %12 = arith.addf %9, %11 : vector<8x64xf32>
    %cst_9 = arith.constant 5.000000e-01 : f32
    %13 = vector.broadcast %cst_9 : f32 to vector<8x64xf32>
    %14 = arith.mulf %13, %12 : vector<8x64xf32>
    %cst_10 = arith.constant 0.707106769 : f32
    %15 = vector.broadcast %cst_10 : f32 to vector<8x64xf32>
    %16 = arith.mulf %12, %15 : vector<8x64xf32>
    %17 = math.erf %16 : vector<8x64xf32>
    %cst_11 = arith.constant 1.000000e+00 : f32
    %18 = vector.broadcast %cst_11 : f32 to vector<8x64xf32>
    %19 = arith.addf %18, %17 : vector<8x64xf32>
    %20 = arith.mulf %14, %19 : vector<8x64xf32>
    %c0_12 = arith.constant 0 : index
    %c0_13 = arith.constant 0 : index
    %c0_14 = arith.constant 0 : index
    %21 = vector.load %arg9[%c0_12, %c0_13, %c0_14] : memref<1x8x64xf32, #tpu.memory_space<vmem>>, vector<1x8x64xf32>
    %22 = vector.shape_cast %21 : vector<1x8x64xf32> to vector<8x64xf32>
    %23 = vector.shape_cast %20 : vector<8x64xf32> to vector<1x8x64xf32>
    tpu.vector_store %arg9[%c0_12, %c0_13, %c0_14], %23 {strides = array<i32>} : memref<1x8x64xf32, #tpu.memory_space<vmem>>, vector<1x8x64xf32>,
    return
  }
  func.func @transform_0(%arg0: i32, %arg1: i32, %arg2: i32) -> (i32, i32, i32) {
    %c0_i32 = arith.constant 0 : i32
    %c0_i32_0 = arith.constant 0 : i32
    return %arg0, %arg1, %c0_i32 : i32, i32, i32
  }
  func.func @transform_1(%arg0: i32, %arg1: i32, %arg2: i32) -> (i32, i32, i32) {
    %c0_i32 = arith.constant 0 : i32
    %c0_i32_0 = arith.constant 0 : i32
    %c0_i32_1 = arith.constant 0 : i32
    %c0_i32_2 = arith.constant 0 : i32
    return %c0_i32, %c0_i32_0, %c0_i32_1 : i32, i32, i32
  }
  func.func @transform_2(%arg0: i32, %arg1: i32, %arg2: i32) -> (i32, i32, i32) {
    %c0_i32 = arith.constant 0 : i32
    %c0_i32_0 = arith.constant 0 : i32
    %c0_i32_1 = arith.constant 0 : i32
    %c0_i32_2 = arith.constant 0 : i32
    return %c0_i32, %c0_i32_0, %c0_i32_1 : i32, i32, i32
  }
  func.func @transform_3(%arg0: i32, %arg1: i32, %arg2: i32) -> (i32, i32, i32) {
    %c0_i32 = arith.constant 0 : i32
    %c0_i32_0 = arith.constant 0 : i32
    %c0_i32_1 = arith.constant 0 : i32
    return %c0_i32, %arg1, %c0_i32_0 : i32, i32, i32
  }
  func.func @transform_4(%arg0: i32, %arg1: i32, %arg2: i32) -> (i32, i32, i32) {
    %c0_i32 = arith.constant 0 : i32
    %c0_i32_0 = arith.constant 0 : i32
    %c0_i32_1 = arith.constant 0 : i32
    return %c0_i32, %c0_i32_0, %arg2 : i32, i32, i32
  }
  func.func @transform_5(%arg0: i32, %arg1: i32, %arg2: i32) -> (i32, i32) {
    %c0_i32 = arith.constant 0 : i32
    %c0_i32_0 = arith.constant 0 : i32
    return %c0_i32, %arg2 : i32, i32
  }
  func.func @transform_6(%arg0: i32, %arg1: i32, %arg2: i32) -> (i32, i32, i32) {
    %c0_i32 = arith.constant 0 : i32
    return %arg0, %arg1, %arg2 : i32, i32, i32
  }
}

</mosaic_0001>

<llo_original>
// kernel: tpu_custom_call.1
$region0: #{tpu_custom_call.1}
  #allocation0 [shape = 'u32[]', space=smem, size = 0x4, offset = 0x4, fixed_abs, tag = 'smem constant byte address 0x4 - core index']
  #allocation1 [shape = 'u32[72,128]{1,0:T(1,128)}', space=vmem, size = 0x9000, scoped, tag = 'internal scratch']
  #allocation2 [shape = 'f32[1,8,32]{2,1,0:T(8,128)}', space=vmem, size = 0x1000, scoped, tag = 'scratch operand']
  %s0 = inlined_call_operand.hbm [shape: f32[2,8,32], index: 0, kind: input, shape index: {}]
  %s1 = inlined_call_operand.hbm [shape: f32[1,1,32], index: 1, kind: input, shape index: {}]
  %s2 = inlined_call_operand.vmem [shape: f32[1,1,32], index: 2, kind: input, shape index: {}]
  %s3 = inlined_call_operand.hbm [shape: f32[1,8,32], index: 3, kind: input, shape index: {}]
  %s4 = inlined_call_operand.hbm [shape: f32[1,32,64], index: 4, kind: input, shape index: {}]
  %s5 = inlined_call_operand.vmem [shape: f32[1,64], index: 5, kind: input, shape index: {}]
  %s6 = inlined_call_operand.hbm [shape: f32[2,8,64], index: 6, kind: output, shape index: {}]
  %s7 = sld [smem:[#allocation0]]
  $region77: #{tpu_custom_call.1} parent=0
    _
  %s9 = ssub.s32 1, %s7
  %s10 = scalar_select 0, %s9, %s7
  $region1: #{tpu_custom_call.1} parent=0
    #allocation3 [shape = 'u8[8192]{0}', space=vmem, size = 0x2000, scoped, tag = 'input window, operand 0']
    #allocation4 [shape = 's32[2]{0}', space=sflag, size = 0x8, scoped, tag = 'scoped memory for tpu_custom_call.1']
    #allocation5 [shape = 's32[2]{0}', space=sflag, size = 0x8, scoped, tag = 'scoped memory for tpu_custom_call.1']
    #allocation6 [shape = 'u8[512]{0}', space=vmem, size = 0x400, scoped, tag = 'input window, operand 1, single buffered']
    #allocation7 [shape = 's32[1]{0}', space=sflag, size = 0x4, scoped, tag = 'scoped memory for tpu_custom_call.1']
    #allocation8 [shape = 'u8[4096]{0}', space=vmem, size = 0x1000, scoped, tag = 'input window, operand 3, single buffered']
    #allocation9 [shape = 'u8[16384]{0}', space=vmem, size = 0x4000, scoped, tag = 'input window, operand 4, single buffered']
    #allocation10 [shape = 's32[1]{0}', space=sflag, size = 0x4, scoped, tag = 'scoped memory for tpu_custom_call.1']
    #allocation11 [shape = 'u8[8192]{0}', space=vmem, size = 0x2000, scoped, tag = 'output window, operand 0']
    %11 = vsyncpa [#allocation4], 0
    %s12 = scalar_lea.sflag [#allocation4], 1
    %13 = vsyncpa %s12, 0
    %14 = vsyncpa [#allocation7], 0
    %15 = vsyncpa [#allocation10], 0
    %16 = vsyncpa [#allocation5], 0
    %s17 = scalar_lea.sflag [#allocation5], 1
    %18 = vsyncpa %s17, 0
    loop: start=0, step=1, limit=4
    $region2: #{tpu_custom_call.1} parent=1 // loop_pre_header
      _
    $region3: #{tpu_custom_call.1} parent=1 // loop_header
      %s20 = sphi 0, %s24
      %p21 = scmp.ge.s32.totalorder %s20, 4
      %s27 = sphi 0, %s46
      %s28 = sphi 0, %s42
      %s29 = sphi 0, %s38
      %s30 = sphi 0, %s27
      %s31 = sphi 0, %s28
      %s32 = sphi 0, %s29
      %s33 = sphi 0, %s30
      %s34 = sphi 0, %s31
      %s35 = sphi 0, %s32
      %s51 = sphi 0, %s53
      %s54 = sphi 0, %s51
      %s55 = sphi 0, %s54
      %s71 = sphi 0, %s55
      %s75 = sphi 0, %s75
      %s77 = sphi 0, %s75
      %s78 = sphi 0, %s77
      %s92 = sphi 0, %s78
      %s96 = sphi 0, %s96
      %s98 = sphi 0, %s96
      %s99 = sphi 0, %s98
      %s113 = sphi 0, %s99
      %s119 = sphi 0, %s121
      %s122 = sphi 0, %s119
      %s123 = sphi 0, %s122
      %s139 = sphi 0, %s123
      %s145 = sphi 0, %s147
      %s148 = sphi 0, %s145
      %s149 = sphi 0, %s148
      %s165 = sphi 0, %s149
      %s171 = sphi 0, %s173
      %s174 = sphi 0, %s171
      %s175 = sphi 0, %s174
      %s191 = sphi 0, %s175
      %s201 = sphi 0, %s203
      %s204 = sphi 0, %s201
      %s205 = sphi 0, %s204
      %s221 = sphi 0, %s205
    $region4: #{tpu_custom_call.1} parent=1 // loop_header_branch
      %23 = sbr.rel (%p21) target = $region8
    $region5: #{tpu_custom_call.1} parent=1 // loop_body
      %s25 = ssub.s32 %s20, 1
      %s26 = ssub.s32 %s20, 2
      %s36 = sadd.s32 1, %s29
      %p37 = scmp.ge.s32.totalorder %s36, 1
      %s38 = scalar_select %p37, 0, %s36
      %s39 = sadd.s32 1, %s28
      %s40 = scalar_select %p37, %s39, %s28
      %p41 = scmp.ge.s32.totalorder %s40, 1
      %s42 = scalar_select %p41, 0, %s40
      %s43 = sadd.s32 1, %s27
      %s44 = scalar_select %p41, %s43, %s27
      %p45 = scmp.ge.s32.totalorder %s44, 2
      %s46 = scalar_select %p45, 0, %s44
      %s47 = ssub.s32 %s27, %s46
      %s48 = ssub.s32 %s28, %s42
      %s49 = sor.u32 %s47, %s48
      %p50 = scmp.eq.s32.totalorder %s49, 0
      %s52 = sadd.s32 %s51, 1
      %s53 = scalar_select %p50, %s51, %s52
      %p56 = pneg %p50
      %p57 = scmp.eq.s32.totalorder %s20, 1
      %p58 = por %p56, %p57
      %p59 = scmp.ne.s32.totalorder %s51, %s54
      %p60 = scmp.eq.s32.totalorder %s20, 0
      %p61 = por %p59, %p60
      %p62 = scmp.ne.s32.totalorder %s51, %s54
      %p63 = scmp.eq.s32.totalorder %s25, 1
      %p64 = por %p62, %p63
      %p65 = scmp.ne.s32.totalorder %s54, %s55
      %p66 = scmp.eq.s32.totalorder %s25, 0
      %p67 = por %p65, %p66
      %p68 = scmp.ne.s32.totalorder %s54, %s55
      %p69 = scmp.eq.s32.totalorder %s26, 1
      %p70 = por %p68, %p69
      %p72 = scmp.ne.s32.totalorder %s55, %s71
      %p73 = scmp.eq.s32.totalorder %s26, 0
      %p74 = por %p72, %p73
      %s76 = sadd.s32 %s75, 1
      %p79 = scmp.eq.s32.totalorder %s20, 1
      %p80 = scmp.ne.s32.totalorder %s75, %s77
      %p81 = scmp.eq.s32.totalorder %s20, 0
      %p82 = por %p80, %p81
      %p83 = scmp.ne.s32.totalorder %s75, %s77
      %p84 = scmp.eq.s32.totalorder %s25, 1
      %p85 = por %p83, %p84
      %p86 = scmp.ne.s32.totalorder %s77, %s78
      %p87 = scmp.eq.s32.totalorder %s25, 0
      %p88 = por %p86, %p87
      %p89 = scmp.ne.s32.totalorder %s77, %s78
      %p90 = scmp.eq.s32.totalorder %s26, 1
      %p91 = por %p89, %p90
      %p93 = scmp.ne.s32.totalorder %s78, %s92
      %p94 = scmp.eq.s32.totalorder %s26, 0
      %p95 = por %p93, %p94
      %s97 = sadd.s32 %s96, 1
      %p100 = scmp.eq.s32.totalorder %s20, 1
      %p101 = scmp.ne.s32.totalorder %s96, %s98
      %p102 = scmp.eq.s32.totalorder %s20, 0
      %p103 = por %p101, %p102
      %p104 = scmp.ne.s32.totalorder %s96, %s98
      %p105 = scmp.eq.s32.totalorder %s25, 1
      %p106 = por %p104, %p105
      %p107 = scmp.ne.s32.totalorder %s98, %s99
      %p108 = scmp.eq.s32.totalorder %s25, 0
      %p109 = por %p107, %p108
      %p110 = scmp.ne.s32.totalorder %s98, %s99
      %p111 = scmp.eq.s32.totalorder %s26, 1
      %p112 = por %p110, %p111
      %p114 = scmp.ne.s32.totalorder %s99, %s113
      %p115 = scmp.eq.s32.totalorder %s26, 0
      %p116 = por %p114, %p115
      %s117 = ssub.s32 %s28, %s42
      %p118 = scmp.eq.s32.totalorder %s117, 0
      %s120 = sadd.s32 %s119, 1
      %s121 = scalar_select %p118, %s119, %s120
      %p124 = pneg %p118
      %p125 = scmp.eq.s32.totalorder %s20, 1
      %p126 = por %p124, %p125
      %p127 = scmp.ne.s32.totalorder %s119, %s122
      %p128 = scmp.eq.s32.totalorder %s20, 0
      %p129 = por %p127, %p128
      %p130 = scmp.ne.s32.totalorder %s119, %s122
      %p131 = scmp.eq.s32.totalorder %s25, 1
      %p132 = por %p130, %p131
      %p133 = scmp.ne.s32.totalorder %s122, %s123
      %p134 = scmp.eq.s32.totalorder %s25, 0
      %p135 = por %p133, %p134
      %p136 = scmp.ne.s32.totalorder %s122, %s123
      %p137 = scmp.eq.s32.totalorder %s26, 1
      %p138 = por %p136, %p137
      %p140 = scmp.ne.s32.totalorder %s123, %s139
      %p141 = scmp.eq.s32.totalorder %s26, 0
      %p142 = por %p140, %p141
      %s143 = ssub.s32 %s29, %s38
      %p144 = scmp.eq.s32.totalorder %s143, 0
      %s146 = sadd.s32 %s145, 1
      %s147 = scalar_select %p144, %s145, %s146
      %p150 = pneg %p144
      %p151 = scmp.eq.s32.totalorder %s20, 1
      %p152 = por %p150, %p151
      %p153 = scmp.ne.s32.totalorder %s145, %s148
      %p154 = scmp.eq.s32.totalorder %s20, 0
      %p155 = por %p153, %p154
      %p156 = scmp.ne.s32.totalorder %s145, %s148
      %p157 = scmp.eq.s32.totalorder %s25, 1
      %p158 = por %p156, %p157
      %p159 = scmp.ne.s32.totalorder %s148, %s149
      %p160 = scmp.eq.s32.totalorder %s25, 0
      %p161 = por %p159, %p160
      %p162 = scmp.ne.s32.totalorder %s148, %s149
      %p163 = scmp.eq.s32.totalorder %s26, 1
      %p164 = por %p162, %p163
      %p166 = scmp.ne.s32.totalorder %s149, %s165
      %p167 = scmp.eq.s32.totalorder %s26, 0
      %p168 = por %p166, %p167
      %s169 = ssub.s32 %s29, %s38
      %p170 = scmp.eq.s32.totalorder %s169, 0
      %s172 = sadd.s32 %s171, 1
      %s173 = scalar_select %p170, %s171, %s172
      %p176 = pneg %p170
      %p177 = scmp.eq.s32.totalorder %s20, 1
      %p178 = por %p176, %p177
      %p179 = scmp.ne.s32.totalorder %s171, %s174
      %p180 = scmp.eq.s32.totalorder %s20, 0
      %p181 = por %p179, %p180
      %p182 = scmp.ne.s32.totalorder %s171, %s174
      %p183 = scmp.eq.s32.totalorder %s25, 1
      %p184 = por %p182, %p183
      %p185 = scmp.ne.s32.totalorder %s174, %s175
      %p186 = scmp.eq.s32.totalorder %s25, 0
      %p187 = por %p185, %p186
      %p188 = scmp.ne.s32.totalorder %s174, %s175
      %p189 = scmp.eq.s32.totalorder %s26, 1
      %p190 = por %p188, %p189
      %p192 = scmp.ne.s32.totalorder %s175, %s191
      %p193 = scmp.eq.s32.totalorder %s26, 0
      %p194 = por %p192, %p193
      %s195 = ssub.s32 %s27, %s46
      %s196 = ssub.s32 %s28, %s42
      %s197 = sor.u32 %s195, %s196
      %s198 = ssub.s32 %s29, %s38
      %s199 = sor.u32 %s197, %s198
      %p200 = scmp.eq.s32.totalorder %s199, 0
      %s202 = sadd.s32 %s201, 1
      %s203 = scalar_select %p200, %s201, %s202
      %p206 = pneg %p200
      %p207 = scmp.eq.s32.totalorder %s20, 1
      %p208 = por %p206, %p207
      %p209 = scmp.ne.s32.totalorder %s201, %s204
      %p210 = scmp.eq.s32.totalorder %s20, 0
      %p211 = por %p209, %p210
      %p212 = scmp.ne.s32.totalorder %s201, %s204
      %p213 = scmp.eq.s32.totalorder %s25, 1
      %p214 = por %p212, %p213
      %p215 = scmp.ne.s32.totalorder %s204, %s205
      %p216 = scmp.eq.s32.totalorder %s25, 0
      %p217 = por %p215, %p216
      %p218 = scmp.ne.s32.totalorder %s204, %s205
      %p219 = scmp.eq.s32.totalorder %s26, 1
      %p220 = por %p218, %p219
      %p222 = scmp.ne.s32.totalorder %s205, %s221
      %p223 = scmp.eq.s32.totalorder %s26, 0
      %p224 = por %p222, %p223
      %p225 = scmp.le.s32.totalorder 1, %s20
      %p226 = scmp.lt.s32.totalorder %s20, 3
      %p227 = pnand %p225, %p226
      %p228 = pneg %p227
      // Predicated region
      $region9: #{tpu_custom_call.1} parent=5 // pred_check
        _
      $region10: #{tpu_custom_call.1} parent=5 // pred_check_branch
        %230 = sbr.rel (%p227) target = $region12
      $region11: #{tpu_custom_call.1} parent=5 // pred_region
        %s231 = ssub.s32 %s20, 1
        // Predicated region
        $region13: #{tpu_custom_call.1} parent=11 // pred_check
          %p232 = pneg %p88
        $region14: #{tpu_custom_call.1} parent=11 // pred_check_branch
          %234 = sbr.rel (%p232) target = $region16
        $region15: #{tpu_custom_call.1} parent=11 // pred_region
          %236 = vsyncadd [#allocation7], 0
          %s238 = sshll.u32 %s1, 4
          %s239 = int_to_ptr.hbm [resolvable:$true] %s238
          %s240 = sshll.u32 [#allocation6], 4
          %s241 = int_to_ptr.vmem [resolvable:$true] %s240
          %243 = dma.hbm_to_vmem [thread:$0]  %s239, 16, %s241, [#allocation7]
        $region16: #{tpu_custom_call.1} parent=11 // pred_fallthru
          _
        // Predicated region
        $region17: #{tpu_custom_call.1} parent=11 // pred_check
          %p244 = pneg %p109
        $region18: #{tpu_custom_call.1} parent=11 // pred_check_branch
          %246 = sbr.rel (%p244) target = $region20
        $region19: #{tpu_custom_call.1} parent=11 // pred_region
          _
        $region20: #{tpu_custom_call.1} parent=11 // pred_fallthru
          _
        // Predicated region
        $region21: #{tpu_custom_call.1} parent=11 // pred_check
          %p247 = pneg %p135
        $region22: #{tpu_custom_call.1} parent=11 // pred_check_branch
          %249 = sbr.rel (%p247) target = $region24
        $region23: #{tpu_custom_call.1} parent=11 // pred_region
          %251 = vsyncadd [#allocation7], 0
          %s252 = smul.addr %s31, 8
          %s253 = scalar_lea.hbm %s3, %s252
          %s255 = sshll.u32 %s253, 4
          %s256 = int_to_ptr.hbm [resolvable:$true] %s255
          %s257 = sshll.u32 [#allocation8], 4
          %s258 = int_to_ptr.vmem [resolvable:$true] %s257
          %260 = dma.hbm_to_vmem [thread:$0]  %s256, 128, %s258, [#allocation7]
        $region24: #{tpu_custom_call.1} parent=11 // pred_fallthru
          _
        // Predicated region
        $region25: #{tpu_custom_call.1} parent=11 // pred_check
          %p261 = pneg %p161
        $region26: #{tpu_custom_call.1} parent=11 // pred_check_branch
          %263 = sbr.rel (%p261) target = $region28
        $region27: #{tpu_custom_call.1} parent=11 // pred_region
          %265 = vsyncadd [#allocation10], 0
          %s266 = smul.addr %s32, 8
          %s267 = scalar_lea.hbm %s4, %s266
          %s268 = sshll.u32 %s267, 4
          %s269 = int_to_ptr.hbm [resolvable:$true] %s268
          %s270 = sshll.u32 [#allocation9], 4
          %s271 = int_to_ptr.vmem [resolvable:$true] %s270
          %276 = dma.hbm_to_vmem [thread:$0]  %s269, 512, %s271, [#allocation10], 128, 128, 8
        $region28: #{tpu_custom_call.1} parent=11 // pred_fallthru
          _
        // Predicated region
        $region29: #{tpu_custom_call.1} parent=11 // pred_check
          %p277 = pneg %p187
        $region30: #{tpu_custom_call.1} parent=11 // pred_check_branch
          %279 = sbr.rel (%p277) target = $region32
        $region31: #{tpu_custom_call.1} parent=11 // pred_region
          %p280 = scmp.lt.s32.totalorder %s32, 0
          %s281 = scalar_select %p280, %s32, 0
          %s282 = scalar_lea.vmem %s5, %s281
        $region32: #{tpu_custom_call.1} parent=11 // pred_fallthru
          _
      $region12: #{tpu_custom_call.1} parent=5 // pred_fallthru
        _
      %p283 = scmp.lt.s32.totalorder %s20, 2
      // Predicated region
      $region33: #{tpu_custom_call.1} parent=5 // pred_check
        %p284 = pneg %p283
      $region34: #{tpu_custom_call.1} parent=5 // pred_check_branch
        %286 = sbr.rel (%p284) target = $region36
      $region35: #{tpu_custom_call.1} parent=5 // pred_region
        // Predicated region
        $region37: #{tpu_custom_call.1} parent=35 // pred_check
          %p287 = pneg %p61
        $region38: #{tpu_custom_call.1} parent=35 // pred_check_branch
          %289 = sbr.rel (%p287) target = $region40
        $region39: #{tpu_custom_call.1} parent=35 // pred_region
          %s290 = sand.u32 %s51, 1
          %s291 = scalar_lea.sflag [#allocation4], %s290
          %s292 = sand.u32 %s51, 1
          %s293 = smul.addr %s292, 8
          %s294 = scalar_lea.vmem [#allocation3], %s293
          %296 = vsyncadd %s291, 0
          %s297 = sadd.s32 %s28, %s27
          %s298 = smul.addr %s297, 8
          %s299 = scalar_lea.hbm %s0, %s298
          %s301 = sshll.u32 %s299, 4
          %s302 = int_to_ptr.hbm [resolvable:$true] %s301
          %s303 = sshll.u32 %s294, 4
          %s304 = int_to_ptr.vmem [resolvable:$true] %s303
          %306 = dma.hbm_to_vmem [thread:$0]  %s302, 128, %s304, %s291
        $region40: #{tpu_custom_call.1} parent=35 // pred_fallthru
          _
      $region36: #{tpu_custom_call.1} parent=5 // pred_fallthru
        _
      %p307 = scmp.le.s32.totalorder 1, %s20
      %p308 = scmp.lt.s32.totalorder %s20, 3
      %p309 = pnand %p307, %p308
      %p310 = pneg %p309
      // Predicated region
      $region41: #{tpu_custom_call.1} parent=5 // pred_check
        _
      $region42: #{tpu_custom_call.1} parent=5 // pred_check_branch
        %312 = sbr.rel (%p309) target = $region44
      $region43: #{tpu_custom_call.1} parent=5 // pred_region
        %s313 = ssub.s32 %s20, 1
        %s314 = sand.u32 %s54, 1
        %s315 = scalar_lea.sflag [#allocation4], %s314
        %s316 = sand.u32 %s54, 1
        %s317 = smul.addr %s316, 8
        %s318 = scalar_lea.vmem [#allocation3], %s317
        // Predicated region
        $region45: #{tpu_custom_call.1} parent=43 // pred_check
          %p319 = pneg %p67
        $region46: #{tpu_custom_call.1} parent=43 // pred_check_branch
          %321 = sbr.rel (%p319) target = $region48
        $region47: #{tpu_custom_call.1} parent=43 // pred_region
          %323 = dma.done %s315, 128
        $region48: #{tpu_custom_call.1} parent=43 // pred_fallthru
          _
        // Predicated region
        $region49: #{tpu_custom_call.1} parent=43 // pred_check
          %p324 = pneg %p88
        $region50: #{tpu_custom_call.1} parent=43 // pred_check_branch
          %326 = sbr.rel (%p324) target = $region52
        $region51: #{tpu_custom_call.1} parent=43 // pred_region
          %328 = dma.done [#allocation7], 16
        $region52: #{tpu_custom_call.1} parent=43 // pred_fallthru
          _
        // Predicated region
        $region53: #{tpu_custom_call.1} parent=43 // pred_check
          %p329 = pneg %p135
        $region54: #{tpu_custom_call.1} parent=43 // pred_check_branch
          %331 = sbr.rel (%p329) target = $region56
        $region55: #{tpu_custom_call.1} parent=43 // pred_region
          %333 = dma.done [#allocation7], 128
        $region56: #{tpu_custom_call.1} parent=43 // pred_fallthru
          _
        // Predicated region
        $region57: #{tpu_custom_call.1} parent=43 // pred_check
          %p334 = pneg %p161
        $region58: #{tpu_custom_call.1} parent=43 // pred_check_branch
          %336 = sbr.rel (%p334) target = $region60
        $region59: #{tpu_custom_call.1} parent=43 // pred_region
          %338 = dma.done [#allocation10], 512
        $region60: #{tpu_custom_call.1} parent=43 // pred_fallthru
          _
        %s339 = sand.u32 %s54, 1
        %s340 = scalar_lea.sflag [#allocation4], %s339
        %s341 = sand.u32 %s54, 1
        %s342 = smul.addr %s341, 8
        %s343 = scalar_lea.vmem [#allocation3], %s342
        %p344 = pneg %p67
        %p345 = pneg %p64
        %p346 = pneg %p88
        %p347 = pneg %p85
        %p348 = pneg %p109
        %p349 = pneg %p106
        %p350 = pneg %p135
        %p351 = pneg %p132
        %p352 = pneg %p161
        %p353 = pneg %p158
        %p354 = scmp.lt.s32.totalorder %s32, 0
        %s355 = scalar_select %p354, %s32, 0
        %s356 = scalar_lea.vmem %s5, %s355
        %p357 = pneg %p187
        %p358 = pneg %p184
        %p359 = pneg %p217
        %p360 = pneg %p214
        %s361 = sand.u32 %s204, 1
        %s362 = scalar_lea.sflag [#allocation5], %s361
        %s363 = sand.u32 %s204, 1
        %s364 = smul.addr %s363, 8
        %s365 = scalar_lea.vmem [#allocation11], %s364
        %p366 = scmp.lt.s32.totalorder %s32, 0
        %s367 = scalar_select %p366, %s32, 0
        %s368 = scalar_lea.vmem %s5, %s367
        %p369 = scmp.eq.s32.totalorder %s32, 0
        // Predicated region
        $region61: #{tpu_custom_call.1} parent=43 // pred_check
          %p370 = pneg %p369
        $region62: #{tpu_custom_call.1} parent=43 // pred_check_branch
          %372 = sbr.rel (%p370) target = $region64
        $region63: #{tpu_custom_call.1} parent=43 // pred_region
          %v373 = vld [vmem:[%s318] sm:$0xff]
          %vm374 = vcmask 261120
          %v375 = vsel %vm374, %v373, 0.0
          %376 = vadd.xlane.f32.xlu0 %v375
          %v377 = vpop.xlane.xlu0 %376
          %v378 = vmul.f32 %v377, 0.03125
          %v379 = vsub.f32 %v373, %v378
          %v380 = vmul.f32 %v379, %v379
          %v381 = vsel %vm374, %v380, 0.0
          %382 = vadd.xlane.f32.xlu0 %v381
          %v383 = vpop.xlane.xlu0 %382
          %v384 = vmul.f32 %v383, 0.03125
          %v385 = vadd.f32 %v384, 1e-05
          %v386 = vrsqrt.pop %v385
          %v387 = vmul.f32 %v386, %v385
          %v388 = vmul.f32 %v387, %v386
          %v389 = vmul.f32 0.5, %v388
          %v390 = vsub.f32 1.5, %v389
          %v391 = vmul.f32 %v386, %v390
          %vm392 = vweird.f32 %v385
          %vm393 = vweird.f32 %v386
          %vm394 = vmor %vm392, %vm393
          %v395 = vsel %vm394, %v386, %v391
          %v396 = vmul.f32 %v379, %v395
          %v397 = vld [vmem:[#allocation6] sm:$0x1]
          %v399 = vperm.slane %v397, 0
          %v401 = vmul.f32 %v396, %v399
          %v402 = vld [vmem:[%s2] sm:$0x1]
          %v404 = vperm.slane %v402, 0
          %v406 = vadd.f32 %v401, %v404
          %v407 = vld [vmem:[#allocation8] sm:$0xff]
          %v408 = vadd.f32 %v406, %v407
          %409 = vst.msk [vmem:[#allocation2] sm:$0xff] %vm374, %v408
        $region64: #{tpu_custom_call.1} parent=43 // pred_fallthru
          _
        %v410 = vld [vmem:[#allocation2] sm:$0xff]
        %v411 = vld [vmem:[#allocation9] sm:$0xff]
        %v412 = vld [vmem:[#allocation9 + $0x8] sm:$0xff]
        %v413 = vld [vmem:[#allocation9 + $0x10] sm:$0xff]
        %v414 = vld [vmem:[#allocation9 + $0x18] sm:$0xff]
        %v415 = vld [vmem:[%s368] sm:$0x1]
        %v417 = vperm.slane %v415, 0
        %vm419 = vcmask 261120
        %v421 = vsel %vm419, %v410, 0
        %423 = vmatpush.msra.mxu0 0.0
        %424 = vmatpush.msra.mxu0 0.0
        %425 = vmatpush.msra.mxu0 0.0
        %426 = vmatpush.msra.mxu0 0.0
        %427 = vmatpush.msra.mxu0 0.0
        %428 = vmatpush.msra.mxu0 0.0
        %429 = vmatpush.msra.mxu0 0.0
        %430 = vmatpush.msra.mxu0 0.0
        %431 = vmatpush.msra.mxu0 0.0
        %432 = vmatpush.msra.mxu0 0.0
        %433 = vmatpush.msra.mxu0 0.0
        %434 = vmatpush.msra.mxu0 0.0
        %435 = vmatpush.msra.mxu0 %v414
        %436 = vmatpush.msra.mxu0 %v413
        %437 = vmatpush.msra.mxu0 %v412
        %438 = vmatpush.msra.mxu0 %v411
        %439 = vmatmul.f32.gmra.mxu0 %v421
        %v440 = vpop.f32.mrf.mxu0
        %v441 = vadd.f32 %v417, %v440
        %442 = vdwg.mxu0
        %v443 = vmul.f32 %v441, 0.5
        %v444 = vmul.f32 %v441, 0.70710677
        %v445 = vmul.f32 %v444, %v444
        %v446 = vmin.f32 16.0, %v445
        %v447 = vmul.f32 %v446, 2.1237322e-06
        %v448 = vadd.f32 %v447, 0.00028619796
        %v449 = vmul.f32 %v446, %v448
        %v450 = vadd.f32 %v449, 0.0036580483
        %v451 = vmul.f32 %v446, %v450
        %v452 = vadd.f32 %v451, 0.05243302
        %v453 = vmul.f32 %v446, %v452
        %v454 = vadd.f32 %v453, 0.18741608
        %v455 = vmul.f32 %v446, %v454
        %v456 = vadd.f32 %v455, 1.1283791
        %v457 = vmul.f32 %v444, %v456
        %v458 = vmul.f32 %v446, 3.8918573e-05
        %v459 = vadd.f32 %v458, 0.001143296
        %v460 = vmul.f32 %v446, %v459
        %v461 = vadd.f32 %v460, 0.014752088
        %v462 = vmul.f32 %v446, %v461
        %v463 = vadd.f32 %v462, 0.112945676
        %v464 = vmul.f32 %v446, %v463
        %v465 = vadd.f32 %v464, 0.4994258
        %v466 = vmul.f32 %v446, %v465
        %v467 = vadd.f32 %v466, 1.0
        %v468 = vrcp.pop %v467
        %v469 = vmul.f32 %v467, %v468
        %v470 = vsub.f32 1.0, %v469
        %v471 = vmul.f32 %v468, %v470
        %v472 = vadd.f32 %v468, %v471
        %vm473 = vweird.f32 %v467
        %vm474 = vweird.f32 %v468
        %vm475 = vmor %vm473, %vm474
        %v476 = vsel %vm475, %v468, %v472
        %v477 = vand.u32 2147483647, %v467
        %vm478 = vcmp.eq.f32.partialorder %v477, 8.507059e+37
        %v479 = vand.u32 %v467, 2147483648
        %v480 = vor.u32 1.1754944e-38, %v479
        %v481 = vsel %vm478, %v480, %v476
        %v482 = vmul.f32 %v457, %v481
        %v483 = vmin.f32 %v482, 1.0
        %v484 = vmax.f32 %v483, -1.0
        %v485 = vadd.f32 %v484, 1.0
        %v486 = vmul.f32 %v443, %v485
        %vm487 = vcmask 523264
        %488 = vst.msk [vmem:[%s365] sm:$0xff] %vm487, %v486
        %s489 = sand.u32 %s204, 1
        %s490 = scalar_lea.sflag [#allocation5], %s489
        %s491 = sand.u32 %s204, 1
        %s492 = smul.addr %s491, 8
        %s493 = scalar_lea.vmem [#allocation11], %s492
        // Predicated region
        $region65: #{tpu_custom_call.1} parent=43 // pred_check
          %p494 = pneg %p214
        $region66: #{tpu_custom_call.1} parent=43 // pred_check_branch
          %496 = sbr.rel (%p494) target = $region68
        $region67: #{tpu_custom_call.1} parent=43 // pred_region
          %498 = vsyncadd %s490, 0
          %s499 = sadd.s32 %s32, %s31
          %s500 = sadd.s32 %s499, %s30
          %s501 = smul.addr %s500, 8
          %s502 = scalar_lea.hbm %s6, %s501
          %s504 = sshll.u32 %s493, 4
          %s505 = int_to_ptr.vmem [resolvable:$true] %s504
          %s506 = sshll.u32 %s502, 4
          %s507 = int_to_ptr.hbm [resolvable:$true] %s506
          %509 = dma.vmem_to_hbm [thread:$0]  %s505, 128, %s507, %s490
        $region68: #{tpu_custom_call.1} parent=43 // pred_fallthru
          _
      $region44: #{tpu_custom_call.1} parent=5 // pred_fallthru
        _
      %p510 = scmp.le.s32.totalorder 2, %s20
      // Predicated region
      $region69: #{tpu_custom_call.1} parent=5 // pred_check
        %p511 = pneg %p510
      $region70: #{tpu_custom_call.1} parent=5 // pred_check_branch
        %513 = sbr.rel (%p511) target = $region72
      $region71: #{tpu_custom_call.1} parent=5 // pred_region
        %s514 = ssub.s32 %s20, 2
        // Predicated region
        $region73: #{tpu_custom_call.1} parent=71 // pred_check
          %p515 = pneg %p220
        $region74: #{tpu_custom_call.1} parent=71 // pred_check_branch
          %517 = sbr.rel (%p515) target = $region76
        $region75: #{tpu_custom_call.1} parent=71 // pred_region
          %s518 = sand.u32 %s205, 1
          %s519 = scalar_lea.sflag [#allocation5], %s518
          %s520 = sand.u32 %s205, 1
          %s521 = smul.addr %s520, 8
          %s522 = scalar_lea.vmem [#allocation11], %s521
          %524 = dma.done %s519, 128
        $region76: #{tpu_custom_call.1} parent=71 // pred_fallthru
          _
      $region72: #{tpu_custom_call.1} parent=5 // pred_fallthru
        _
    $region6: #{tpu_custom_call.1} parent=1 // loop_footer
      %s24 = sadd.s32 1, %s20
    $region7: #{tpu_custom_call.1} parent=1 // loop_footer_branch
      %19 = sbr.rel target = $region3
    $region8: #{tpu_custom_call.1} parent=1 // loop_exit
      _
    %525 = vsyncpa [#allocation4], 1
    %s526 = scalar_lea.sflag [#allocation4], 1
    %527 = vsyncpa %s526, 1
    %528 = vsyncpa [#allocation7], 1
    %529 = vsyncpa [#allocation10], 1
    %530 = vsyncpa [#allocation5], 1
    %s531 = scalar_lea.sflag [#allocation5], 1
    %532 = vsyncpa %s531, 1

</llo_original>
